<compile_context>
chip_gen: v5e
topology: v5e:2x2
jax: 0.10.0
libtpu: 0.0.40
codegen_flags: <defaults>
</compile_context>

<pallas_src>
import functools
import math
from typing import NamedTuple

import jax
import jax.numpy as jnp
from jax.experimental import pallas as pl
from jax.experimental.pallas import tpu as pltpu


def _round_up(x, m):
    return ((x + m - 1) // m) * m


def _pick_tile(padded_dim, max_tile, granule):
    """Largest multiple of `granule` <= max_tile that exactly divides padded_dim."""
    best = granule
    t = granule
    limit = min(max(max_tile, granule), padded_dim)
    while t <= limit:
        if padded_dim % t == 0:
            best = t
        t += granule
    return best


def _equal_linear_lrelu_kernel(x_ref, w_ref, b_ref, o_ref, acc_ref, *,
                               scale_gain, negative_slope):
    # x_ref: (tm, tk) bf16 ; w_ref: (tk, tn) bf16 [K, N] ; b_ref: (1, tn) f32
    k = pl.program_id(2)

    @pl.when(k == 0)
    def _():
        acc_ref[...] = jnp.zeros_like(acc_ref)

    # bf16 operands straight to the MXU, f32 accumulation in VMEM scratch.
    acc_ref[...] += jnp.dot(x_ref[...], w_ref[...],
                            preferred_element_type=jnp.float32)

    @pl.when(k == pl.num_programs(2) - 1)
    def _():
        # sqrt(2) gain is folded into scale_gain and the prepared bias, so the
        # leaky-relu is a single select (gain > 0 preserves the sign of z).
        z = acc_ref[...] * scale_gain + b_ref[...]
        o_ref[...] = jnp.where(z >= 0.0, z, negative_slope * z).astype(o_ref.dtype)


class EqualLinearPlan(NamedTuple):
    in_dim: int
    out_dim: int
    Kp: int
    Np: int
    tk: int
    tn: int
    scale_gain: float
    negative_slope: float


def prepare_equal_linear_params(weight, bias, *, lr_mul=1.0, negative_slope=0.2,
                                gain=math.sqrt(2.0), tn_max=512, tk_max=2048,
                                operand_dtype=jnp.bfloat16):
    """One-time parameter prep (hoisted out of the per-call hot path).

    weight: (out_dim, in_dim) PyTorch layout; bias: (out_dim,).
    Returns (w_kn, b_gain, plan): pre-transposed/padded/bf16 weight [Kp, Np],
    pre-scaled/padded f32 bias [1, Np], and the static tiling plan.
    """
    out_dim, in_dim = weight.shape
    Kp = _round_up(in_dim, 128)
    Np = _round_up(out_dim, 128)

    # Megacore (v7x): keep >= 2 N blocks when possible so both TensorCores get
    # work even when the M axis collapses to a single block.
    tn_cap = Np // 2 if Np >= 256 else Np
    tn = _pick_tile(Np, min(tn_max, max(tn_cap, 128)), 128)
    tk = _pick_tile(Kp, tk_max, 128)

    # Equalized-LR scale uses the *logical* in_dim; sqrt(2) gain folded in.
    scale_gain = (1.0 / math.sqrt(in_dim)) * lr_mul * gain

    # Pre-transpose to [K, N], cast to bf16, zero-pad (padded K rows contribute
    # 0 to the dot; padded N columns are sliced off after the kernel).
    w_kn = jnp.pad(weight.T.astype(operand_dtype),
                   ((0, Kp - in_dim), (0, Np - out_dim)))
    b_gain = jnp.pad(
        (bias.astype(jnp.float32) * (lr_mul * gain)).reshape(1, out_dim),
        ((0, 0), (0, Np - out_dim)))

    plan = EqualLinearPlan(in_dim=in_dim, out_dim=out_dim, Kp=Kp, Np=Np,
                           tk=tk, tn=tn, scale_gain=float(scale_gain),
                           negative_slope=float(negative_slope))
    return w_kn, b_gain, plan


@functools.partial(jax.jit, static_argnames=("plan", "tm_max"))
def equal_linear_leaky_relu(x, w_kn, b_gain, plan, tm_max=512):
    """x: (B, in_dim) float; w_kn/b_gain/plan from prepare_equal_linear_params."""
    B, in_dim = x.shape
    assert in_dim == plan.in_dim
    Kp, Np, tk, tn = plan.Kp, plan.Np, plan.tk, plan.tn

    # bf16 x tile needs a 16-row sublane granule.
    Mp = _round_up(B, 16)
    tm = _pick_tile(Mp, tm_max, 16)

    x_p = jnp.pad(x, ((0, Mp - B), (0, Kp - in_dim))).astype(jnp.bfloat16)

    grid = (Mp // tm, Np // tn, Kp // tk)

    kernel = functools.partial(_equal_linear_lrelu_kernel,
                               scale_gain=plan.scale_gain,
                               negative_slope=plan.negative_slope)

    out_bytes = jnp.dtype(x.dtype).itemsize
    # Double-buffered bf16 input tiles + f32 bias + double-buffered output tile
    # + f32 accumulator scratch. Capped at 48 MiB (safe on v7x's 64 MiB/TC).
    vmem_est = (2 * (tm * tk * 2 + tk * tn * 2 + tn * 4)
                + 2 * tm * tn * out_bytes + tm * tn * 4)
    vmem_limit = int(min(48 * 1024 * 1024,
                         max(32 * 1024 * 1024, 2 * vmem_est)))

    cost = pl.CostEstimate(
        flops=2 * Mp * Np * Kp,
        transcendentals=0,
        bytes_accessed=(Mp * Kp * 2 + Kp * Np * 2 + Np * 4 + Mp * Np * out_bytes))

    out_p = pl.pallas_call(
        kernel,
        out_shape=jax.ShapeDtypeStruct((Mp, Np), x.dtype),
        grid_spec=pltpu.PrefetchScalarGridSpec(
            num_scalar_prefetch=0,
            grid=grid,
            in_specs=[
                pl.BlockSpec((tm, tk), lambda i, j, k: (i, k)),   # x tile (bf16)
                pl.BlockSpec((tk, tn), lambda i, j, k: (k, j)),   # [K,N] weight tile (bf16)
                pl.BlockSpec((1, tn), lambda i, j, k: (0, j)),    # prepared bias (f32)
            ],
            out_specs=pl.BlockSpec((tm, tn), lambda i, j, k: (i, j)),
            scratch_shapes=[pltpu.VMEM((tm, tn), jnp.float32)],
        ),
        compiler_params=pltpu.CompilerParams(
            dimension_semantics=("parallel", "parallel", "arbitrary"),
            vmem_limit_bytes=vmem_limit,
        ),
        cost_estimate=cost,
    )(x_p, w_kn, b_gain)

    return out_p[:B, :plan.out_dim]


def _reference(x, weight, bias, *, lr_mul=1.0):
    in_dim = x.shape[-1]
    scale = (1.0 / math.sqrt(in_dim)) * lr_mul
    out = x @ (weight * scale).T
    out = out + (bias * lr_mul)[None, :]
    return jnp.where(out >= 0, out, 0.2 * out) * math.sqrt(2.0)


if __name__ == "__main__":
    key = jax.random.PRNGKey(0)
    k_x, k_w = jax.random.split(key)

    batch, in_dim, out_dim = 8, 32, 32
    lr_mul = 1.0
    bias_init = 0.0

    # Deterministic parameter init mirroring the module's __init__:
    #   weight ~ randn(out_dim, in_dim) / lr_mul ; bias = bias_init
    x = jax.random.normal(k_x, (batch, in_dim), dtype=jnp.float32)
    weight = jax.random.normal(k_w, (out_dim, in_dim), dtype=jnp.float32) / lr_mul
    bias = jnp.full((out_dim,), bias_init, dtype=jnp.float32)

    # One-time parameter prep (not part of the per-call hot path).
    w_kn, b_gain, plan = prepare_equal_linear_params(weight, bias, lr_mul=lr_mul)

    out = equal_linear_leaky_relu(x, w_kn, b_gain, plan)
    out = jax.block_until_ready(out)

    # Tight check against a reference using bf16-quantized operands (the MXU
    # input precision); accumulation and epilogue are f32 in both paths.
    xq = x.astype(jnp.bfloat16).astype(jnp.float32)
    wq = weight.astype(jnp.bfloat16).astype(jnp.float32)
    ref_q = _reference(xq, wq, bias, lr_mul=lr_mul)
    # Loose check against the full-f32 reference (bf16 operand quantization).
    ref_f32 = _reference(x, weight, bias, lr_mul=lr_mul)

    assert out.shape == (batch, out_dim)
    assert jnp.allclose(out, ref_q, atol=1e-3, rtol=1e-3), (
        float(jnp.max(jnp.abs(out - ref_q))))
    assert jnp.allclose(out, ref_f32, atol=1e-1, rtol=5e-2), (
        float(jnp.max(jnp.abs(out - ref_f32))))

    print("KERNEL_OK")
</pallas_src>

<mosaic_0001>
module attributes {stable_mosaic.version = 11 : i64} {
  func.func @_equal_linear_lrelu_kernel(%arg0: i32, %arg1: i32, %arg2: i32, %arg3: memref<16x128xbf16, #tpu.memory_space<vmem>>, %arg4: memref<128x128xbf16, #tpu.memory_space<vmem>>, %arg5: memref<1x128xf32, #tpu.memory_space<vmem>>, %arg6: memref<16x128xf32, #tpu.memory_space<vmem>>, %arg7: memref<16x128xf32, #tpu.memory_space<vmem>>) attributes {dimension_semantics = [#tpu.dimension_semantics<parallel>, #tpu.dimension_semantics<parallel>, #tpu.dimension_semantics<arbitrary>], iteration_bounds = array<i64: 1, 1, 1>, scalar_prefetch = 0 : i64, scratch_operands = 1 : i64, tpu.core_type = #tpu.core_type<tc>, window_params = [{transform_indices = @transform_0, window_bounds = array<i64: 16, 128>}, {transform_indices = @transform_1, window_bounds = array<i64: 128, 128>}, {transform_indices = @transform_2, window_bounds = array<i64: 1, 128>}, {transform_indices = @transform_3, window_bounds = array<i64: 16, 128>}]} {
    %c0_i32 = arith.constant 0 : i32
    %0 = arith.cmpi eq, %arg2, %c0_i32 : i32
    %1 = arith.extui %0 : i1 to i32
    %c0_i32_0 = arith.constant 0 : i32
    %2 = arith.cmpi ne, %1, %c0_i32_0 : i32
    scf.if %2 {
      %cst_10 = arith.constant 0.000000e+00 : f32
      %12 = vector.broadcast %cst_10 : f32 to vector<16x128xf32>
      %c0_11 = arith.constant 0 : index
      %c0_12 = arith.constant 0 : index
      %13 = vector.load %arg7[%c0_11, %c0_12] : memref<16x128xf32, #tpu.memory_space<vmem>>, vector<16x128xf32>
      tpu.vector_store %arg7[%c0_11, %c0_12], %12 {strides = array<i32>} : memref<16x128xf32, #tpu.memory_space<vmem>>, vector<16x128xf32>,
    } else {
    }
    %c0 = arith.constant 0 : index
    %c0_1 = arith.constant 0 : index
    %3 = vector.load %arg7[%c0, %c0_1] : memref<16x128xf32, #tpu.memory_space<vmem>>, vector<16x128xf32>
    %c0_2 = arith.constant 0 : index
    %c0_3 = arith.constant 0 : index
    %4 = vector.load %arg3[%c0_2, %c0_3] : memref<16x128xbf16, #tpu.memory_space<vmem>>, vector<16x128xbf16>
    %c0_4 = arith.constant 0 : index
    %c0_5 = arith.constant 0 : index
    %5 = vector.load %arg4[%c0_4, %c0_5] : memref<128x128xbf16, #tpu.memory_space<vmem>>, vector<128x128xbf16>
    %cst = arith.constant dense<0.000000e+00> : vector<16x128xf32>
    %6 = tpu.matmul %4, %5, %cst {dimension_numbers = #tpu.dot_dimension_numbers<[1], [0], [0], [1], [0, 0, 1, 1], [], []>} : vector<16x128xbf16>, vector<128x128xbf16>, vector<16x128xf32> -> vector<16x128xf32>
    %7 = arith.addf %3, %6 : vector<16x128xf32>
    %c0_6 = arith.constant 0 : index
    %c0_7 = arith.constant 0 : index
    %8 = vector.load %arg7[%c0_6, %c0_7] : memref<16x128xf32, #tpu.memory_space<vmem>>, vector<16x128xf32>
    tpu.vector_store %arg7[%c0_6, %c0_7], %7 {strides = array<i32>} : memref<16x128xf32, #tpu.memory_space<vmem>>, vector<16x128xf32>,
    %c0_i32_8 = arith.constant 0 : i32
    %9 = arith.cmpi eq, %arg2, %c0_i32_8 : i32
    %10 = arith.extui %9 : i1 to i32
    %c0_i32_9 = arith.constant 0 : i32
    %11 = arith.cmpi ne, %10, %c0_i32_9 : i32
    scf.if %11 {
      %c0_10 = arith.constant 0 : index
      %c0_11 = arith.constant 0 : index
      %12 = vector.load %arg7[%c0_10, %c0_11] : memref<16x128xf32, #tpu.memory_space<vmem>>, vector<16x128xf32>
      %cst_12 = arith.constant 2.500000e-01 : f32
      %13 = vector.broadcast %cst_12 : f32 to vector<16x128xf32>
      %14 = arith.mulf %12, %13 : vector<16x128xf32>
      %c0_13 = arith.constant 0 : index
      %c0_14 = arith.constant 0 : index
      %15 = vector.load %arg5[%c0_13, %c0_14] : memref<1x128xf32, #tpu.memory_space<vmem>>, vector<1x128xf32>
      %16 = vector.broadcast %15 : vector<1x128xf32> to vector<16x128xf32>
      %17 = arith.addf %14, %16 : vector<16x128xf32>
      %cst_15 = arith.constant 0.000000e+00 : f32
      %18 = vector.broadcast %cst_15 : f32 to vector<16x128xf32>
      %19 = arith.cmpf oge, %17, %18 : vector<16x128xf32>
      %cst_16 = arith.constant 2.000000e-01 : f32
      %20 = vector.broadcast %cst_16 : f32 to vector<16x128xf32>
      %21 = arith.mulf %20, %17 : vector<16x128xf32>
      %22 = arith.select %19, %17, %21 : vector<16x128xi1>, vector<16x128xf32>
      %c0_17 = arith.constant 0 : index
      %c0_18 = arith.constant 0 : index
      %23 = vector.load %arg6[%c0_17, %c0_18] : memref<16x128xf32, #tpu.memory_space<vmem>>, vector<16x128xf32>
      tpu.vector_store %arg6[%c0_17, %c0_18], %22 {strides = array<i32>} : memref<16x128xf32, #tpu.memory_space<vmem>>, vector<16x128xf32>,
    } else {
    }
    return
  }
  func.func @transform_0(%arg0: i32, %arg1: i32, %arg2: i32) -> (i32, i32) {
    %c0_i32 = arith.constant 0 : i32
    return %arg0, %arg2 : i32, i32
  }
  func.func @transform_1(%arg0: i32, %arg1: i32, %arg2: i32) -> (i32, i32) {
    %c0_i32 = arith.constant 0 : i32
    return %arg2, %arg1 : i32, i32
  }
  func.func @transform_2(%arg0: i32, %arg1: i32, %arg2: i32) -> (i32, i32) {
    %c0_i32 = arith.constant 0 : i32
    %c0_i32_0 = arith.constant 0 : i32
    return %c0_i32, %arg1 : i32, i32
  }
  func.func @transform_3(%arg0: i32, %arg1: i32, %arg2: i32) -> (i32, i32) {
    %c0_i32 = arith.constant 0 : i32
    return %arg0, %arg1 : i32, i32
  }
}

</mosaic_0001>

<llo_original>
// kernel: equal_linear_leaky_relu.1
$region0: #{equal_linear_leaky_relu.1}
  #allocation0 [shape = 'u32[]', space=smem, size = 0x4, offset = 0x4, fixed_abs, tag = 'smem constant byte address 0x4 - core index']
  #allocation1 [shape = 'u32[72,128]{1,0:T(1,128)}', space=vmem, size = 0x9000, scoped, tag = 'internal scratch']
  #allocation2 [shape = 'f32[16,128]{1,0:T(8,128)}', space=vmem, size = 0x2000, scoped, tag = 'scratch operand']
  %s0 = inlined_call_operand.vmem [shape: bf16[16,128], index: 0, kind: input, shape index: {}]
  %s1 = inlined_call_operand.hbm [shape: bf16[128,128], index: 1, kind: input, shape index: {}]
  %s2 = inlined_call_operand.vmem [shape: f32[1,128], index: 2, kind: input, shape index: {}]
  %s3 = inlined_call_operand.vmem [shape: f32[16,128], index: 3, kind: output, shape index: {}]
  %s4 = sld [smem:[#allocation0]]
  $region34: #{equal_linear_leaky_relu.1} parent=0
    _
  %s6 = ssub.s32 1, %s4
  %s7 = scalar_select 0, %s6, %s4
  $region1: #{equal_linear_leaky_relu.1} parent=0
    #allocation3 [shape = 'u8[32768]{0}', space=vmem, size = 0x8000, scoped, tag = 'input window, operand 1, single buffered']
    #allocation4 [shape = 's32[1]{0}', space=sflag, size = 0x4, scoped, tag = 'scoped memory for equal_linear_leaky_relu.1']
    %8 = vsyncpa [#allocation4], 0
    // Predicated region
    $region2: #{equal_linear_leaky_relu.1} parent=1 // pred_check
      _
    $region3: #{equal_linear_leaky_relu.1} parent=1 // pred_check_branch
      %10 = sbr.rel (0) target = $region5
    $region4: #{equal_linear_leaky_relu.1} parent=1 // pred_region
      _
    $region5: #{equal_linear_leaky_relu.1} parent=1 // pred_fallthru
      _
    // Predicated region
    $region6: #{equal_linear_leaky_relu.1} parent=1 // pred_check
      _
    $region7: #{equal_linear_leaky_relu.1} parent=1 // pred_check_branch
      %12 = sbr.rel (0) target = $region9
    $region8: #{equal_linear_leaky_relu.1} parent=1 // pred_region
      %14 = vsyncadd [#allocation4], 0
      %s15 = sshll.u32 %s1, 4
      %s16 = int_to_ptr.hbm [resolvable:$true] %s15
      %s17 = sshll.u32 [#allocation3], 4
      %s18 = int_to_ptr.vmem [resolvable:$true] %s17
      %23 = dma.hbm_to_vmem [thread:$0]  %s16, 1024, %s18, [#allocation4], 64, 64, 4
    $region9: #{equal_linear_leaky_relu.1} parent=1 // pred_fallthru
      _
    // Predicated region
    $region10: #{equal_linear_leaky_relu.1} parent=1 // pred_check
      _
    $region11: #{equal_linear_leaky_relu.1} parent=1 // pred_check_branch
      %25 = sbr.rel (0) target = $region13
    $region12: #{equal_linear_leaky_relu.1} parent=1 // pred_region
      _
    $region13: #{equal_linear_leaky_relu.1} parent=1 // pred_fallthru
      _
    // Predicated region
    $region14: #{equal_linear_leaky_relu.1} parent=1 // pred_check
      _
    $region15: #{equal_linear_leaky_relu.1} parent=1 // pred_check_branch
      %27 = sbr.rel (0) target = $region17
    $region16: #{equal_linear_leaky_relu.1} parent=1 // pred_region
      %29 = dma.done [#allocation4], 1024
    $region17: #{equal_linear_leaky_relu.1} parent=1 // pred_fallthru
      _
    %p30 = scmp.eq.s32.totalorder 0, 0
    // Predicated region
    $region18: #{equal_linear_leaky_relu.1} parent=1 // pred_check
      %p31 = pneg %p30
    $region19: #{equal_linear_leaky_relu.1} parent=1 // pred_check_branch
      %33 = sbr.rel (%p31) target = $region21
    $region20: #{equal_linear_leaky_relu.1} parent=1 // pred_region
      %34 = vst [vmem:[#allocation2] sm:$0xff] 0.0
      %35 = vst [vmem:[#allocation2 + $0x8] sm:$0xff] 0.0
    $region21: #{equal_linear_leaky_relu.1} parent=1 // pred_fallthru
      _
    %v36 = vld [vmem:[#allocation2] sm:$0xff]
    %v37 = vld [vmem:[#allocation2 + $0x8] sm:$0xff]
    %v38 = vld [vmem:[%s0] sm:$0xf]
    %v39 = vld [vmem:[%s0 + $0x4] sm:$0xf]
    %v40 = vld [vmem:[#allocation3] sm:$0xf]
    %v41 = vld [vmem:[#allocation3 + $0x4] sm:$0xf]
    %v42 = vld [vmem:[#allocation3 + $0x8] sm:$0xf]
    %v43 = vld [vmem:[#allocation3 + $0xc] sm:$0xf]
    %v44 = vld [vmem:[#allocation3 + $0x10] sm:$0xf]
    %v45 = vld [vmem:[#allocation3 + $0x14] sm:$0xf]
    %v46 = vld [vmem:[#allocation3 + $0x18] sm:$0xf]
    %v47 = vld [vmem:[#allocation3 + $0x1c] sm:$0xf]
    %v48 = vld [vmem:[#allocation3 + $0x20] sm:$0xf]
    %v49 = vld [vmem:[#allocation3 + $0x24] sm:$0xf]
    %v50 = vld [vmem:[#allocation3 + $0x28] sm:$0xf]
    %v51 = vld [vmem:[#allocation3 + $0x2c] sm:$0xf]
    %v52 = vld [vmem:[#allocation3 + $0x30] sm:$0xf]
    %v53 = vld [vmem:[#allocation3 + $0x34] sm:$0xf]
    %v54 = vld [vmem:[#allocation3 + $0x38] sm:$0xf]
    %v55 = vld [vmem:[#allocation3 + $0x3c] sm:$0xf]
    %v58 = vunpack.c.l.b16 %v38
    %v59 = vunpack.c.l.b16 %v39
    %v60 = vpack.c.b16 %v59, %v58
    %v78 = vunpack.c.l.b16 %v40
    %v79 = vunpack.c.l.b16 %v41
    %v80 = vunpack.c.l.b16 %v42
    %v81 = vunpack.c.l.b16 %v43
    %v82 = vunpack.c.l.b16 %v44
    %v83 = vunpack.c.l.b16 %v45
    %v84 = vunpack.c.l.b16 %v46
    %v85 = vunpack.c.l.b16 %v47
    %v86 = vunpack.c.l.b16 %v48
    %v87 = vunpack.c.l.b16 %v49
    %v88 = vunpack.c.l.b16 %v50
    %v89 = vunpack.c.l.b16 %v51
    %v90 = vunpack.c.l.b16 %v52
    %v91 = vunpack.c.l.b16 %v53
    %v92 = vunpack.c.l.b16 %v54
    %v93 = vunpack.c.l.b16 %v55
    %v94 = vpack.c.b16 %v79, %v78
    %v95 = vpack.c.b16 %v81, %v80
    %v96 = vpack.c.b16 %v83, %v82
    %v97 = vpack.c.b16 %v85, %v84
    %v98 = vpack.c.b16 %v87, %v86
    %v99 = vpack.c.b16 %v89, %v88
    %v100 = vpack.c.b16 %v91, %v90
    %v101 = vpack.c.b16 %v93, %v92
    %110 = vmatpush.bf16.msra.mxu0 %v101
    %111 = vmatpush.bf16.msra.mxu0 %v100
    %112 = vmatpush.bf16.msra.mxu0 %v99
    %113 = vmatpush.bf16.msra.mxu0 %v98
    %114 = vmatpush.bf16.msra.mxu0 %v97
    %115 = vmatpush.bf16.msra.mxu0 %v96
    %116 = vmatpush.bf16.msra.mxu0 %v95
    %117 = vmatpush.bf16.msra.mxu0 %v94
    %118 = vmatmul.bf16.gmra.mxu0 %v60
    %v119 = vpop.f32.mrf.mxu0
    %v120 = vadd.f32 0.0, %v119
    %v121 = vpop.f32.mrf.mxu0
    %v122 = vadd.f32 0.0, %v121
    %123 = vdwg.mxu0
    %v124 = vadd.f32 %v36, %v120
    %v125 = vadd.f32 %v37, %v122
    %126 = vst [vmem:[#allocation2] sm:$0xff] %v124
    %127 = vst [vmem:[#allocation2 + $0x8] sm:$0xff] %v125
    // Predicated region
    $region22: #{equal_linear_leaky_relu.1} parent=1 // pred_check
      %p128 = pneg %p30
    $region23: #{equal_linear_leaky_relu.1} parent=1 // pred_check_branch
      %130 = sbr.rel (%p128) target = $region25
    $region24: #{equal_linear_leaky_relu.1} parent=1 // pred_region
      %v131 = vld [vmem:[#allocation2] sm:$0xff]
      %v132 = vld [vmem:[#allocation2 + $0x8] sm:$0xff]
      %v133 = vmul.f32 %v131, 0.25
      %v134 = vmul.f32 %v132, 0.25
      %v135 = vld [vmem:[%s2] sm:$0x1]
      %v137 = vperm.slane %v135, 0
      %v139 = vadd.f32 %v133, %v137
      %v140 = vadd.f32 %v134, %v137
      %vm141 = vcmp.ge.f32.partialorder %v139, 0.0
      %vm142 = vcmp.ge.f32.partialorder %v140, 0.0
      %v143 = vmul.f32 %v139, 0.2
      %v144 = vmul.f32 %v140, 0.2
      %v145 = vsel %vm141, %v139, %v143
      %v146 = vsel %vm142, %v140, %v144
      %147 = vst [vmem:[%s3] sm:$0xff] %v145
      %148 = vst [vmem:[%s3 + $0x8] sm:$0xff] %v146
    $region25: #{equal_linear_leaky_relu.1} parent=1 // pred_fallthru
      _
    // Predicated region
    $region26: #{equal_linear_leaky_relu.1} parent=1 // pred_check
      _
    $region27: #{equal_linear_leaky_relu.1} parent=1 // pred_check_branch
      %150 = sbr.rel (0) target = $region29
    $region28: #{equal_linear_leaky_relu.1} parent=1 // pred_region
      _
    $region29: #{equal_linear_leaky_relu.1} parent=1 // pred_fallthru
      _
    // Predicated region
    $region30: #{equal_linear_leaky_relu.1} parent=1 // pred_check
      _
    $region31: #{equal_linear_leaky_relu.1} parent=1 // pred_check_branch
      %152 = sbr.rel (0) target = $region33
    $region32: #{equal_linear_leaky_relu.1} parent=1 // pred_region
      _
    $region33: #{equal_linear_leaky_relu.1} parent=1 // pred_fallthru
      _
    %153 = vsyncpa [#allocation4], 1

</llo_original>
